<compile_context>
chip_gen: v6e
topology: v6e:2x2x1
jax: 0.10.0
libtpu: 0.0.40
codegen_flags: <defaults>
</compile_context>

<pallas_src>
import jax
import jax.numpy as jnp
from jax.experimental import pallas as pl
from jax.experimental.pallas import tpu as pltpu

EPS = 1e-5


def _decoder_inception_kernel(x_ref, r1_ref, r2_ref, b1_ref, b2_ref, out_ref):
    # x_ref  : (Nb, L, Cp)        f32 activations, channels-last, lane-dense
    # r1_ref : (3*Cp, 3*Cp)       bf16 K-packed stage-1 weights; row blocks by
    #                             tap (x[l-1], x[l], x[l+1]); col blocks [y1|y3|h]
    # r2_ref : (3*Cp, Cp)         bf16 K-packed stage-2 (w5b) weights
    # b1_ref : (1, 3*Cp)          f32 folded biases for [y1 | y3 | h]
    # b2_ref : (1, Cp)            f32 folded bias for y5
    # out_ref: (Nb, L, Cp)        f32
    Nb, L, Cp = x_ref.shape
    M = Nb * L

    x = x_ref[...].reshape(M, Cp)                          # (M, Cp) f32

    # Per-element boundary masks (positions within each length-L element).
    pos = jax.lax.broadcasted_iota(jnp.int32, (Nb, L, Cp), 1).reshape(M, Cp)
    first = pos == 0
    last = pos == L - 1

    # +/-1 shifted activations via XLU rolls; wrap-around rows (which would
    # leak data across batch-element boundaries) are masked off below.
    xm_raw = pltpu.roll(x, 1, axis=0)                      # row l -> x[l-1]
    xq_raw = pltpu.roll(x, M - 1, axis=0)                  # row l -> x[l+1]
    xm = jnp.where(first, 0.0, xm_raw)                     # zero pad for convT
    xq = jnp.where(last, 0.0, xq_raw)

    # ---- branch 4: MaxPool1d(k=3, s=1, p=1) with implicit -inf padding ----
    yp = jnp.maximum(
        jnp.maximum(jnp.where(first, -jnp.inf, xm_raw), x),
        jnp.where(last, -jnp.inf, xq_raw))

    # ---- stage 1: one K-packed MXU pass -> [y1 | y3 | h], K = 3*Cp ----
    lhs1 = jnp.concatenate(
        [xm.astype(jnp.bfloat16), x.astype(jnp.bfloat16), xq.astype(jnp.bfloat16)],
        axis=1)                                            # (M, 3*Cp) bf16
    z1 = jnp.dot(lhs1, r1_ref[...], preferred_element_type=jnp.float32)
    z1 = jnp.maximum(z1 + b1_ref[...], 0.0)                # (M, 3*Cp)

    y13 = z1[:, 0:Cp] + z1[:, Cp:2 * Cp]                   # y_c1 + y_c3
    h = z1[:, 2 * Cp:3 * Cp]                               # relu(bn(convT3_1(x)))

    # ---- stage 2: y_c5 = relu(bn(convT3_2(h))), same K-packed pattern ----
    hm = jnp.where(first, 0.0, pltpu.roll(h, 1, axis=0))
    hq = jnp.where(last, 0.0, pltpu.roll(h, M - 1, axis=0))
    lhs2 = jnp.concatenate(
        [hm.astype(jnp.bfloat16), h.astype(jnp.bfloat16), hq.astype(jnp.bfloat16)],
        axis=1)                                            # (M, 3*Cp) bf16
    z2 = jnp.dot(lhs2, r2_ref[...], preferred_element_type=jnp.float32)
    y5 = jnp.maximum(z2 + b2_ref[...], 0.0)                # (M, Cp)

    out_ref[...] = (y13 + y5 + yp).reshape(Nb, L, Cp).astype(out_ref.dtype)


def decoder_inception_basic(x_ncl, params):
    """x_ncl: (N, C, L) float32, matching the PyTorch ConvTranspose1d layout."""
    N, C, L = x_ncl.shape
    Cp = ((C + 127) // 128) * 128                          # lane-dense channels

    # Channels-last activations, zero-padded channel tail.
    # NOTE(perf): for C << 128 the padded HBM materialization is the dominant
    # cost for large inputs; the follow-up is to read (Nb, C, L) blocks and
    # transpose/pad in VMEM instead (kept wrapper-side here for robustness).
    x_nlc = jnp.transpose(x_ncl, (0, 2, 1)).astype(jnp.float32)
    x_nlc = jnp.pad(x_nlc, ((0, 0), (0, 0), (0, Cp - C)))

    # Batch packing: process Nb elements per grid step (M = Nb*L rows per dot).
    # Flattening (Nb, L) -> M in the kernel is a free reshape only when L % 8
    # == 0 (sublane-aligned), otherwise fall back to one element per step.
    MAX_ROWS = 512
    Nb = min(N, max(1, MAX_ROWS // L)) if L % 8 == 0 else 1
    Ng = -(-N // Nb)                                       # cdiv
    Npad = Ng * Nb
    if Npad != N:
        x_nlc = jnp.pad(x_nlc, ((0, Npad - N), (0, 0), (0, 0)))
    # TODO(synk): for very long L add an L-tiling axis with a +/-1-row halo so
    # per-step VMEM stays inside v7x's 64 MiB budget; not needed at these sizes.

    # Fold inference BatchNorm + ConvTranspose bias into weights / bias.
    def fold(bn, conv_bias):
        g, b, m, v = bn
        s = g * jax.lax.rsqrt(v + EPS)                     # per-Cout scale
        return s, b + (conv_bias - m) * s                  # folded bias

    s1, c1 = fold(params['bn1'], params['b1'])
    s3, c3 = fold(params['bn3'], params['b3'])
    s5a, c5a = fold(params['bn5a'], params['b5a'])
    s5b, c5b = fold(params['bn5b'], params['b5b'])

    def padW(w):                                           # (C, C) -> (Cp, Cp)
        return jnp.pad(w, ((0, Cp - C), (0, Cp - C)))

    def padb(b):                                           # (C,)  -> (Cp,)
        return jnp.pad(b, (0, Cp - C))

    # ConvTranspose1d weight is (Cin, Cout, K); BN scale multiplies Cout.
    W1 = params['W1'][:, :, 0] * s1[None, :]
    W3 = params['W3'] * s3[None, :, None]
    W5a = params['W5a'] * s5a[None, :, None]
    W5b = params['W5b'] * s5b[None, :, None]

    zero = jnp.zeros((Cp, Cp), jnp.float32)
    # K-packed stage-1 RHS: row block 0/1/2 multiplies x[l-1] / x[l] / x[l+1];
    # column blocks are [y1 | y3 | h].  (Transposed-conv tap order is flipped.)
    R1 = jnp.stack([
        jnp.concatenate([zero,     padW(W3[:, :, 2]), padW(W5a[:, :, 2])], axis=1),
        jnp.concatenate([padW(W1), padW(W3[:, :, 1]), padW(W5a[:, :, 1])], axis=1),
        jnp.concatenate([zero,     padW(W3[:, :, 0]), padW(W5a[:, :, 0])], axis=1),
    ], axis=0).reshape(3 * Cp, 3 * Cp).astype(jnp.bfloat16)
    R2 = jnp.stack([padW(W5b[:, :, 2]), padW(W5b[:, :, 1]), padW(W5b[:, :, 0])],
                   axis=0).reshape(3 * Cp, Cp).astype(jnp.bfloat16)

    B1 = jnp.concatenate([padb(c1), padb(c3), padb(c5a)])[None, :]   # (1, 3*Cp)
    B2 = padb(c5b)[None, :]                                          # (1, Cp)

    flops = 24 * Npad * L * Cp * Cp
    bytes_accessed = (2 * Npad * L * Cp * 4                # activations in + out
                      + int(R1.size) * 2 + int(R2.size) * 2
                      + int(B1.size) * 4 + int(B2.size) * 4)

    out_nlc = pl.pallas_call(
        _decoder_inception_kernel,
        grid=(Ng,),
        in_specs=[
            pl.BlockSpec((Nb, L, Cp), lambda n: (n, 0, 0)),          # activations
            pl.BlockSpec((3 * Cp, 3 * Cp), lambda n: (0, 0)),        # resident W
            pl.BlockSpec((3 * Cp, Cp), lambda n: (0, 0)),
            pl.BlockSpec((1, 3 * Cp), lambda n: (0, 0)),
            pl.BlockSpec((1, Cp), lambda n: (0, 0)),
        ],
        out_specs=pl.BlockSpec((Nb, L, Cp), lambda n: (n, 0, 0)),
        out_shape=jax.ShapeDtypeStruct((Npad, L, Cp), jnp.float32),
        compiler_params=pltpu.CompilerParams(
            dimension_semantics=("parallel",)),
        cost_estimate=pl.CostEstimate(
            flops=flops, transcendentals=0, bytes_accessed=bytes_accessed),
    )(x_nlc, R1, R2, B1, B2)

    return jnp.transpose(out_nlc[:N, :, :C], (0, 2, 1))    # back to (N, C, L)


# ---------------- pure-JAX reference (for correctness check) ----------------
def _ref_forward(x, params):
    def convT(x, W, pad):        # ConvTranspose1d, stride 1, W: (Cin, Cout, K)
        K = W.shape[-1]
        Wc = jnp.flip(jnp.transpose(W, (1, 0, 2)), axis=-1)   # (Cout, Cin, K)
        return jax.lax.conv_general_dilated(
            x, Wc, window_strides=(1,), padding=[(K - 1 - pad, K - 1 - pad)],
            dimension_numbers=('NCH', 'OIH', 'NCH'))

    def branch(x, W, b, bn, pad):
        g, be, m, v = bn
        y = convT(x, W, pad) + b[None, :, None]
        yn = (y - m[None, :, None]) / jnp.sqrt(v[None, :, None] + EPS)
        return jnp.maximum(yn * g[None, :, None] + be[None, :, None], 0.0)

    y1 = branch(x, params['W1'], params['b1'], params['bn1'], 0)
    y3 = branch(x, params['W3'], params['b3'], params['bn3'], 1)
    h = branch(x, params['W5a'], params['b5a'], params['bn5a'], 1)
    y5 = branch(h, params['W5b'], params['b5b'], params['bn5b'], 1)
    L = x.shape[-1]
    xp = jnp.pad(x, ((0, 0), (0, 0), (1, 1)), constant_values=-jnp.inf)
    yp = jnp.maximum(jnp.maximum(xp[:, :, 0:L], xp[:, :, 1:L + 1]),
                     xp[:, :, 2:L + 2])
    return y1 + y3 + y5 + yp


def _make_params(key, C):
    keys = jax.random.split(key, 24)
    it = iter(keys)

    def convT_w(k, ksz):         # ConvTranspose1d weight: (Cin, Cout, K)
        return 0.2 * jax.random.normal(k, (C, C, ksz), jnp.float32)

    def conv_b(k):
        return 0.1 * jax.random.normal(k, (C,), jnp.float32)

    def bn(k0, k1, k2, k3):
        gamma = 1.0 + 0.1 * jax.random.normal(k0, (C,), jnp.float32)
        beta = 0.1 * jax.random.normal(k1, (C,), jnp.float32)
        mean = 0.1 * jax.random.normal(k2, (C,), jnp.float32)
        var = jax.random.uniform(k3, (C,), jnp.float32, 0.5, 1.5)
        return (gamma, beta, mean, var)

    return {
        'W1': convT_w(next(it), 1), 'b1': conv_b(next(it)),
        'W3': convT_w(next(it), 3), 'b3': conv_b(next(it)),
        'W5a': convT_w(next(it), 3), 'b5a': conv_b(next(it)),
        'W5b': convT_w(next(it), 3), 'b5b': conv_b(next(it)),
        'bn1': bn(next(it), next(it), next(it), next(it)),
        'bn3': bn(next(it), next(it), next(it), next(it)),
        'bn5a': bn(next(it), next(it), next(it), next(it)),
        'bn5b': bn(next(it), next(it), next(it), next(it)),
    }


if __name__ == "__main__":
    N, C, L = 2, 8, 32                        # (batch, channels, length), NCL
    key = jax.random.PRNGKey(0)
    kx, kp = jax.random.split(key)
    x = jax.random.normal(kx, (N, C, L), jnp.float32)
    params = _make_params(kp, C)

    out = decoder_inception_basic(x, params)
    out = jax.block_until_ready(out)

    ref = _ref_forward(x, params)
    assert out.shape == (N, C, L)
    err = float(jnp.max(jnp.abs(out - ref)))
    # bf16 matmuls with f32 accumulation -> loosened tolerance vs f32 reference
    assert jnp.allclose(out, ref, rtol=5e-2, atol=5e-2), f"max abs err {err}"

    print("KERNEL_OK")
</pallas_src>

<mosaic_0001>
module attributes {stable_mosaic.version = 11 : i64} {
  func.func @_decoder_inception_kernel(%arg0: i32, %arg1: memref<2x32x128xf32, #tpu.memory_space<vmem>>, %arg2: memref<384x384xbf16, #tpu.memory_space<vmem>>, %arg3: memref<384x128xbf16, #tpu.memory_space<vmem>>, %arg4: memref<1x384xf32, #tpu.memory_space<vmem>>, %arg5: memref<1x128xf32, #tpu.memory_space<vmem>>, %arg6: memref<2x32x128xf32, #tpu.memory_space<vmem>>) attributes {dimension_semantics = [#tpu.dimension_semantics<parallel>], iteration_bounds = array<i64: 1>, scalar_prefetch = 0 : i64, scratch_operands = 0 : i64, tpu.core_type = #tpu.core_type<tc>, window_params = [{transform_indices = @transform_0, window_bounds = array<i64: 2, 32, 128>}, {pipeline_mode = #tpu.pipeline_mode<synchronous>, transform_indices = @transform_1, window_bounds = array<i64: 384, 384>}, {pipeline_mode = #tpu.pipeline_mode<synchronous>, transform_indices = @transform_2, window_bounds = array<i64: 384, 128>}, {pipeline_mode = #tpu.pipeline_mode<synchronous>, transform_indices = @transform_3, window_bounds = array<i64: 1, 384>}, {pipeline_mode = #tpu.pipeline_mode<synchronous>, transform_indices = @transform_4, window_bounds = array<i64: 1, 128>}, {transform_indices = @transform_5, window_bounds = array<i64: 2, 32, 128>}]} {
    %c0 = arith.constant 0 : index
    %c0_0 = arith.constant 0 : index
    %c0_1 = arith.constant 0 : index
    %0 = vector.load %arg1[%c0, %c0_0, %c0_1] : memref<2x32x128xf32, #tpu.memory_space<vmem>>, vector<2x32x128xf32>
    %1 = vector.shape_cast %0 : vector<2x32x128xf32> to vector<64x128xf32>
    %2 = tpu.iota {dimensions = array<i32: 1>} : vector<2x32x128xi32>
    %3 = vector.shape_cast %2 : vector<2x32x128xi32> to vector<64x128xi32>
    %c0_i32 = arith.constant 0 : i32
    %4 = vector.broadcast %c0_i32 : i32 to vector<64x128xi32>
    %5 = arith.cmpi eq, %3, %4 : vector<64x128xi32>
    %c31_i32 = arith.constant 31 : i32
    %6 = vector.broadcast %c31_i32 : i32 to vector<64x128xi32>
    %7 = arith.cmpi eq, %3, %6 : vector<64x128xi32>
    %c1_i32 = arith.constant 1 : i32
    %8 = tpu.dynamic_rotate %1 by %c1_i32 dim 0 : vector<64x128xf32>, i32 -> vector<64x128xf32>
    %c63_i32 = arith.constant 63 : i32
    %9 = tpu.dynamic_rotate %1 by %c63_i32 dim 0 : vector<64x128xf32>, i32 -> vector<64x128xf32>
    %cst = arith.constant 0.000000e+00 : f32
    %10 = vector.broadcast %cst : f32 to vector<64x128xf32>
    %11 = arith.select %5, %10, %8 : vector<64x128xi1>, vector<64x128xf32>
    %cst_2 = arith.constant 0.000000e+00 : f32
    %12 = vector.broadcast %cst_2 : f32 to vector<64x128xf32>
    %13 = arith.select %7, %12, %9 : vector<64x128xi1>, vector<64x128xf32>
    %cst_3 = arith.constant 0xFF800000 : f32
    %14 = vector.broadcast %cst_3 : f32 to vector<64x128xf32>
    %15 = arith.select %5, %14, %8 : vector<64x128xi1>, vector<64x128xf32>
    %16 = arith.maximumf %15, %1 : vector<64x128xf32>
    %cst_4 = arith.constant 0xFF800000 : f32
    %17 = vector.broadcast %cst_4 : f32 to vector<64x128xf32>
    %18 = arith.select %7, %17, %9 : vector<64x128xi1>, vector<64x128xf32>
    %19 = arith.maximumf %16, %18 : vector<64x128xf32>
    %20 = arith.truncf %11 : vector<64x128xf32> to vector<64x128xbf16>
    %21 = arith.truncf %1 : vector<64x128xf32> to vector<64x128xbf16>
    %22 = arith.truncf %13 : vector<64x128xf32> to vector<64x128xbf16>
    %23 = tpu.concatenate %20, %21, %22 in 1 : vector<64x128xbf16>, vector<64x128xbf16>, vector<64x128xbf16> -> vector<64x384xbf16>
    %c0_5 = arith.constant 0 : index
    %c0_6 = arith.constant 0 : index
    %24 = vector.load %arg2[%c0_5, %c0_6] : memref<384x384xbf16, #tpu.memory_space<vmem>>, vector<384x384xbf16>
    %cst_7 = arith.constant dense<0.000000e+00> : vector<64x384xf32>
    %25 = tpu.matmul %23, %24, %cst_7 {dimension_numbers = #tpu.dot_dimension_numbers<[1], [0], [0], [1], [0, 0, 1, 1], [], []>} : vector<64x384xbf16>, vector<384x384xbf16>, vector<64x384xf32> -> vector<64x384xf32>
    %c0_8 = arith.constant 0 : index
    %c0_9 = arith.constant 0 : index
    %26 = vector.load %arg4[%c0_8, %c0_9] : memref<1x384xf32, #tpu.memory_space<vmem>>, vector<1x384xf32>
    %27 = vector.broadcast %26 : vector<1x384xf32> to vector<64x384xf32>
    %28 = arith.addf %25, %27 : vector<64x384xf32>
    %cst_10 = arith.constant 0.000000e+00 : f32
    %29 = vector.broadcast %cst_10 : f32 to vector<64x384xf32>
    %30 = arith.maximumf %28, %29 : vector<64x384xf32>
    %31 = vector.extract_strided_slice %30 {offsets = [0, 0], sizes = [64, 128], strides = [1, 1]} : vector<64x384xf32> to vector<64x128xf32>
    %32 = vector.extract_strided_slice %30 {offsets = [0, 128], sizes = [64, 128], strides = [1, 1]} : vector<64x384xf32> to vector<64x128xf32>
    %33 = arith.addf %31, %32 : vector<64x128xf32>
    %34 = vector.extract_strided_slice %30 {offsets = [0, 256], sizes = [64, 128], strides = [1, 1]} : vector<64x384xf32> to vector<64x128xf32>
    %c1_i32_11 = arith.constant 1 : i32
    %35 = tpu.dynamic_rotate %34 by %c1_i32_11 dim 0 : vector<64x128xf32>, i32 -> vector<64x128xf32>
    %cst_12 = arith.constant 0.000000e+00 : f32
    %36 = vector.broadcast %cst_12 : f32 to vector<64x128xf32>
    %37 = arith.select %5, %36, %35 : vector<64x128xi1>, vector<64x128xf32>
    %c63_i32_13 = arith.constant 63 : i32
    %38 = tpu.dynamic_rotate %34 by %c63_i32_13 dim 0 : vector<64x128xf32>, i32 -> vector<64x128xf32>
    %cst_14 = arith.constant 0.000000e+00 : f32
    %39 = vector.broadcast %cst_14 : f32 to vector<64x128xf32>
    %40 = arith.select %7, %39, %38 : vector<64x128xi1>, vector<64x128xf32>
    %41 = arith.truncf %37 : vector<64x128xf32> to vector<64x128xbf16>
    %42 = arith.truncf %34 : vector<64x128xf32> to vector<64x128xbf16>
    %43 = arith.truncf %40 : vector<64x128xf32> to vector<64x128xbf16>
    %44 = tpu.concatenate %41, %42, %43 in 1 : vector<64x128xbf16>, vector<64x128xbf16>, vector<64x128xbf16> -> vector<64x384xbf16>
    %c0_15 = arith.constant 0 : index
    %c0_16 = arith.constant 0 : index
    %45 = vector.load %arg3[%c0_15, %c0_16] : memref<384x128xbf16, #tpu.memory_space<vmem>>, vector<384x128xbf16>
    %cst_17 = arith.constant dense<0.000000e+00> : vector<64x128xf32>
    %46 = tpu.matmul %44, %45, %cst_17 {dimension_numbers = #tpu.dot_dimension_numbers<[1], [0], [0], [1], [0, 0, 1, 1], [], []>} : vector<64x384xbf16>, vector<384x128xbf16>, vector<64x128xf32> -> vector<64x128xf32>
    %c0_18 = arith.constant 0 : index
    %c0_19 = arith.constant 0 : index
    %47 = vector.load %arg5[%c0_18, %c0_19] : memref<1x128xf32, #tpu.memory_space<vmem>>, vector<1x128xf32>
    %48 = vector.broadcast %47 : vector<1x128xf32> to vector<64x128xf32>
    %49 = arith.addf %46, %48 : vector<64x128xf32>
    %cst_20 = arith.constant 0.000000e+00 : f32
    %50 = vector.broadcast %cst_20 : f32 to vector<64x128xf32>
    %51 = arith.maximumf %49, %50 : vector<64x128xf32>
    %52 = arith.addf %33, %51 : vector<64x128xf32>
    %53 = arith.addf %52, %19 : vector<64x128xf32>
    %54 = vector.shape_cast %53 : vector<64x128xf32> to vector<2x32x128xf32>
    %c0_21 = arith.constant 0 : index
    %c0_22 = arith.constant 0 : index
    %c0_23 = arith.constant 0 : index
    %55 = vector.load %arg6[%c0_21, %c0_22, %c0_23] : memref<2x32x128xf32, #tpu.memory_space<vmem>>, vector<2x32x128xf32>
    tpu.vector_store %arg6[%c0_21, %c0_22, %c0_23], %54 {strides = array<i32>} : memref<2x32x128xf32, #tpu.memory_space<vmem>>, vector<2x32x128xf32>,
    return
  }
  func.func @transform_0(%arg0: i32) -> (i32, i32, i32) {
    %c0_i32 = arith.constant 0 : i32
    %c0_i32_0 = arith.constant 0 : i32
    %c0_i32_1 = arith.constant 0 : i32
    return %arg0, %c0_i32, %c0_i32_0 : i32, i32, i32
  }
  func.func @transform_1(%arg0: i32) -> (i32, i32) {
    %c0_i32 = arith.constant 0 : i32
    %c0_i32_0 = arith.constant 0 : i32
    %c0_i32_1 = arith.constant 0 : i32
    return %c0_i32, %c0_i32_0 : i32, i32
  }
  func.func @transform_2(%arg0: i32) -> (i32, i32) {
    %c0_i32 = arith.constant 0 : i32
    %c0_i32_0 = arith.constant 0 : i32
    %c0_i32_1 = arith.constant 0 : i32
    return %c0_i32, %c0_i32_0 : i32, i32
  }
  func.func @transform_3(%arg0: i32) -> (i32, i32) {
    %c0_i32 = arith.constant 0 : i32
    %c0_i32_0 = arith.constant 0 : i32
    %c0_i32_1 = arith.constant 0 : i32
    return %c0_i32, %c0_i32_0 : i32, i32
  }
  func.func @transform_4(%arg0: i32) -> (i32, i32) {
    %c0_i32 = arith.constant 0 : i32
    %c0_i32_0 = arith.constant 0 : i32
    %c0_i32_1 = arith.constant 0 : i32
    return %c0_i32, %c0_i32_0 : i32, i32
  }
  func.func @transform_5(%arg0: i32) -> (i32, i32, i32) {
    %c0_i32 = arith.constant 0 : i32
    %c0_i32_0 = arith.constant 0 : i32
    %c0_i32_1 = arith.constant 0 : i32
    return %arg0, %c0_i32, %c0_i32_0 : i32, i32, i32
  }
}

</mosaic_0001>

<llo_original>
// kernel: tpu_custom_call.1
$region0: #{tpu_custom_call.1}
  #allocation0 [shape = 'u32[]', space=smem, size = 0x4, offset = 0x4, fixed_abs, tag = 'smem constant byte address 0x4 - core index']
  #allocation1 [shape = 'u32[144,128]{1,0:T(1,128)}', space=vmem, size = 0x12000, scoped, tag = 'internal scratch']
  %s0 = inlined_call_operand.hbm [shape: f32[2,32,128], index: 0, kind: input, shape index: {}]
  %s1 = inlined_call_operand.hbm [shape: bf16[384,384], index: 1, kind: input, shape index: {}]
  %s2 = inlined_call_operand.hbm [shape: bf16[384,128], index: 2, kind: input, shape index: {}]
  %s3 = inlined_call_operand.vmem [shape: f32[1,384], index: 3, kind: input, shape index: {}]
  %s4 = inlined_call_operand.vmem [shape: f32[1,128], index: 4, kind: input, shape index: {}]
  %s5 = inlined_call_operand.hbm [shape: f32[2,32,128], index: 5, kind: output, shape index: {}]
  %s6 = sld [smem:[#allocation0]]
  $region42: #{tpu_custom_call.1} parent=0
    _
  %s8 = ssub.s32 1, %s6
  %s9 = scalar_select 0, %s8, %s6
  $region1: #{tpu_custom_call.1} parent=0
    #allocation2 [shape = 'u8[32768]{0}', space=vmem, size = 0x8000, scoped, tag = 'input window, operand 0, single buffered']
    #allocation3 [shape = 's32[1]{0}', space=sflag, size = 0x4, scoped, tag = 'scoped memory for tpu_custom_call.1']
    #allocation4 [shape = 's32[1]{0}', space=sflag, size = 0x4, scoped, tag = 'scoped memory for tpu_custom_call.1']
    #allocation5 [shape = 'u8[294912]{0}', space=vmem, size = 0x48000, scoped, tag = 'input window, operand 1, single buffered']
    #allocation6 [shape = 's32[1]{0}', space=sflag, size = 0x4, scoped, tag = 'scoped memory for tpu_custom_call.1']
    #allocation7 [shape = 'u8[98304]{0}', space=vmem, size = 0x18000, scoped, tag = 'input window, operand 2, single buffered']
    #allocation8 [shape = 'u8[32768]{0}', space=vmem, size = 0x8000, scoped, tag = 'output window, operand 0, single buffered']
    %10 = vsyncpa [#allocation3], 0
    %11 = vsyncpa [#allocation6], 0
    %12 = vsyncpa [#allocation4], 0
    // Predicated region
    $region2: #{tpu_custom_call.1} parent=1 // pred_check
      _
    $region3: #{tpu_custom_call.1} parent=1 // pred_check_branch
      %14 = sbr.rel (0) target = $region5
    $region4: #{tpu_custom_call.1} parent=1 // pred_region
      %s16 = ssub.s32 1024, 1024
      %17 = vsyncadd [#allocation3], %s16
      %s18 = sshll.u32 [#allocation2], 4
      %s19 = int_to_ptr.vmem [resolvable:$true] %s18
      %24 = dma.hbm_to_vmem [thread:$0]  %s0, 1024, %s19, [#allocation3], 128, 128, 8
    $region5: #{tpu_custom_call.1} parent=1 // pred_fallthru
      _
    // Predicated region
    $region6: #{tpu_custom_call.1} parent=1 // pred_check
      _
    $region7: #{tpu_custom_call.1} parent=1 // pred_check_branch
      %26 = sbr.rel (0) target = $region9
    $region8: #{tpu_custom_call.1} parent=1 // pred_region
      %s28 = ssub.s32 9216, 9216
      %29 = vsyncadd [#allocation6], %s28
      %s30 = sshll.u32 [#allocation5], 4
      %s31 = int_to_ptr.vmem [resolvable:$true] %s30
      %36 = dma.hbm_to_vmem [thread:$0]  %s1, 9216, %s31, [#allocation6], 192, 192, 12
    $region9: #{tpu_custom_call.1} parent=1 // pred_fallthru
      _
    // Predicated region
    $region10: #{tpu_custom_call.1} parent=1 // pred_check
      _
    $region11: #{tpu_custom_call.1} parent=1 // pred_check_branch
      %38 = sbr.rel (0) target = $region13
    $region12: #{tpu_custom_call.1} parent=1 // pred_region
      %s40 = ssub.s32 3072, 3072
      %41 = vsyncadd [#allocation6], %s40
      %s42 = sshll.u32 [#allocation7], 4
      %s43 = int_to_ptr.vmem [resolvable:$true] %s42
      %48 = dma.hbm_to_vmem [thread:$0]  %s2, 3072, %s43, [#allocation6], 64, 64, 4
    $region13: #{tpu_custom_call.1} parent=1 // pred_fallthru
      _
    // Predicated region
    $region14: #{tpu_custom_call.1} parent=1 // pred_check
      _
    $region15: #{tpu_custom_call.1} parent=1 // pred_check_branch
      %50 = sbr.rel (0) target = $region17
    $region16: #{tpu_custom_call.1} parent=1 // pred_region
      _
    $region17: #{tpu_custom_call.1} parent=1 // pred_fallthru
      _
    // Predicated region
    $region18: #{tpu_custom_call.1} parent=1 // pred_check
      _
    $region19: #{tpu_custom_call.1} parent=1 // pred_check_branch
      %52 = sbr.rel (0) target = $region21
    $region20: #{tpu_custom_call.1} parent=1 // pred_region
      _
    $region21: #{tpu_custom_call.1} parent=1 // pred_fallthru
      _
    // Predicated region
    $region22: #{tpu_custom_call.1} parent=1 // pred_check
      _
    $region23: #{tpu_custom_call.1} parent=1 // pred_check_branch
      %54 = sbr.rel (0) target = $region25
    $region24: #{tpu_custom_call.1} parent=1 // pred_region
      %55 = dma.done [#allocation3], 1024
    $region25: #{tpu_custom_call.1} parent=1 // pred_fallthru
      _
    // Predicated region
    $region26: #{tpu_custom_call.1} parent=1 // pred_check
      _
    $region27: #{tpu_custom_call.1} parent=1 // pred_check_branch
      %57 = sbr.rel (0) target = $region29
    $region28: #{tpu_custom_call.1} parent=1 // pred_region
      %58 = dma.done [#allocation6], 9216
    $region29: #{tpu_custom_call.1} parent=1 // pred_fallthru
      _
    // Predicated region
    $region30: #{tpu_custom_call.1} parent=1 // pred_check
      _
    $region31: #{tpu_custom_call.1} parent=1 // pred_check_branch
      %60 = sbr.rel (0) target = $region33
    $region32: #{tpu_custom_call.1} parent=1 // pred_region
      %61 = dma.done [#allocation6], 3072
    $region33: #{tpu_custom_call.1} parent=1 // pred_fallthru
      _
    %v63 = vld [vmem:[#allocation2] sm:$0xff]
    %v64 = vld [vmem:[#allocation2 + $0x8] sm:$0xff]
    %v65 = vld [vmem:[#allocation2 + $0x10] sm:$0xff]
    %v66 = vld [vmem:[#allocation2 + $0x18] sm:$0xff]
    %v67 = vld [vmem:[#allocation2 + $0x20] sm:$0xff]
    %v68 = vld [vmem:[#allocation2 + $0x28] sm:$0xff]
    %v69 = vld [vmem:[#allocation2 + $0x30] sm:$0xff]
    %v70 = vld [vmem:[#allocation2 + $0x38] sm:$0xff]
    %v71 = vlaneseq
    %v72 = vshrl.u32 %v71, 7
    %v73 = vadd.s32 %v72, 8
    %v74 = vadd.s32 %v72, 16
    %v75 = vadd.s32 %v72, 24
    %vm76 = vcmp.eq.s32.totalorder %v72, 0
    %vm77 = vcmp.eq.s32.totalorder %v73, 0
    %vm78 = vcmp.eq.s32.totalorder %v74, 0
    %vm79 = vcmp.eq.s32.totalorder %v75, 0
    %vm80 = vcmp.eq.s32.totalorder %v72, 31
    %vm81 = vcmp.eq.s32.totalorder %v73, 31
    %vm82 = vcmp.eq.s32.totalorder %v74, 31
    %vm83 = vcmp.eq.s32.totalorder %v75, 31
    %v84 = vrot.slane %v63, 7
    %v85 = vrot.slane %v64, 7
    %v86 = vrot.slane %v65, 7
    %v87 = vrot.slane %v66, 7
    %v88 = vrot.slane %v67, 7
    %v89 = vrot.slane %v68, 7
    %v90 = vrot.slane %v69, 7
    %v91 = vrot.slane %v70, 7
    %vm92 = vcmp.lt.s32.totalorder %v72, 1
    %v93 = vsel %vm92, %v90, %v91
    %v94 = vsel %vm92, %v89, %v90
    %v95 = vsel %vm92, %v88, %v89
    %v96 = vsel %vm92, %v87, %v88
    %v97 = vsel %vm92, %v86, %v87
    %v98 = vsel %vm92, %v85, %v86
    %v99 = vsel %vm92, %v84, %v85
    %v100 = vsel %vm92, %v91, %v84
    %v101 = vrot.slane %v63, 1
    %v102 = vrot.slane %v64, 1
    %v103 = vrot.slane %v65, 1
    %v104 = vrot.slane %v66, 1
    %v105 = vrot.slane %v67, 1
    %v106 = vrot.slane %v68, 1
    %v107 = vrot.slane %v69, 1
    %v108 = vrot.slane %v70, 1
    %vm109 = vcmp.lt.s32.totalorder %v72, 7
    %v110 = vsel %vm109, %v107, %v108
    %v111 = vsel %vm109, %v106, %v107
    %v112 = vsel %vm109, %v105, %v106
    %v113 = vsel %vm109, %v104, %v105
    %v114 = vsel %vm109, %v103, %v104
    %v115 = vsel %vm109, %v102, %v103
    %v116 = vsel %vm109, %v101, %v102
    %v117 = vsel %vm109, %v108, %v101
    %v118 = vsel %vm76, 0.0, %v100
    %v119 = vsel %vm77, 0.0, %v99
    %v120 = vsel %vm78, 0.0, %v98
    %v121 = vsel %vm79, 0.0, %v97
    %v122 = vsel %vm76, 0.0, %v96
    %v123 = vsel %vm77, 0.0, %v95
    %v124 = vsel %vm78, 0.0, %v94
    %v125 = vsel %vm79, 0.0, %v93
    %v126 = vsel %vm80, 0.0, %v116
    %v127 = vsel %vm81, 0.0, %v115
    %v128 = vsel %vm82, 0.0, %v114
    %v129 = vsel %vm83, 0.0, %v113
    %v130 = vsel %vm80, 0.0, %v112
    %v131 = vsel %vm81, 0.0, %v111
    %v132 = vsel %vm82, 0.0, %v110
    %v133 = vsel %vm83, 0.0, %v117
    %v134 = vsel %vm76, -inf, %v100
    %v135 = vsel %vm77, -inf, %v99
    %v136 = vsel %vm78, -inf, %v98
    %v137 = vsel %vm79, -inf, %v97
    %v138 = vsel %vm76, -inf, %v96
    %v139 = vsel %vm77, -inf, %v95
    %v140 = vsel %vm78, -inf, %v94
    %v141 = vsel %vm79, -inf, %v93
    %v142 = vmax.f32 %v134, %v63
    %v143 = vmax.f32 %v135, %v64
    %v144 = vmax.f32 %v136, %v65
    %v145 = vmax.f32 %v137, %v66
    %v146 = vmax.f32 %v138, %v67
    %v147 = vmax.f32 %v139, %v68
    %v148 = vmax.f32 %v140, %v69
    %v149 = vmax.f32 %v141, %v70
    %v150 = vsel %vm80, -inf, %v116
    %v151 = vsel %vm81, -inf, %v115
    %v152 = vsel %vm82, -inf, %v114
    %v153 = vsel %vm83, -inf, %v113
    %v154 = vsel %vm80, -inf, %v112
    %v155 = vsel %vm81, -inf, %v111
    %v156 = vsel %vm82, -inf, %v110
    %v157 = vsel %vm83, -inf, %v117
    %v158 = vmax.f32 %v142, %v150
    %v159 = vmax.f32 %v143, %v151
    %v160 = vmax.f32 %v144, %v152
    %v161 = vmax.f32 %v145, %v153
    %v162 = vmax.f32 %v146, %v154
    %v163 = vmax.f32 %v147, %v155
    %v164 = vmax.f32 %v148, %v156
    %v165 = vmax.f32 %v149, %v157
    %v166 = vpack.c.bf16 %v119, %v118
    %v167 = vpack.c.bf16 %v121, %v120
    %v168 = vpack.c.bf16 %v123, %v122
    %v169 = vpack.c.bf16 %v125, %v124
    %v170 = vpack.c.bf16 %v64, %v63
    %v171 = vpack.c.bf16 %v66, %v65
    %v172 = vpack.c.bf16 %v68, %v67
    %v173 = vpack.c.bf16 %v70, %v69
    %v174 = vpack.c.bf16 %v127, %v126
    %v175 = vpack.c.bf16 %v129, %v128
    %v176 = vpack.c.bf16 %v131, %v130
    %v177 = vpack.c.bf16 %v133, %v132
    %v178 = vld [vmem:[#allocation5] sm:$0xff]
    %v179 = vld [vmem:[#allocation5 + $0x8] sm:$0xf]
    %v180 = vld [vmem:[#allocation5 + $0xc] sm:$0xff]
    %v181 = vld [vmem:[#allocation5 + $0x14] sm:$0xf]
    %v182 = vld [vmem:[#allocation5 + $0x18] sm:$0xff]
    %v183 = vld [vmem:[#allocation5 + $0x20] sm:$0xf]
    %v184 = vld [vmem:[#allocation5 + $0x24] sm:$0xff]
    %v185 = vld [vmem:[#allocation5 + $0x2c] sm:$0xf]
    %v186 = vld [vmem:[#allocation5 + $0x30] sm:$0xff]
    %v187 = vld [vmem:[#allocation5 + $0x38] sm:$0xf]
    %v188 = vld [vmem:[#allocation5 + $0x3c] sm:$0xff]
    %v189 = vld [vmem:[#allocation5 + $0x44] sm:$0xf]
    %v190 = vld [vmem:[#allocation5 + $0x48] sm:$0xff]
    %v191 = vld [vmem:[#allocation5 + $0x50] sm:$0xf]
    %v192 = vld [vmem:[#allocation5 + $0x54] sm:$0xff]
    %v193 = vld [vmem:[#allocation5 + $0x5c] sm:$0xf]
    %v194 = vld [vmem:[#allocation5 + $0x60] sm:$0xff]
    %v195 = vld [vmem:[#allocation5 + $0x68] sm:$0xf]
    %v196 = vld [vmem:[#allocation5 + $0x6c] sm:$0xff]
    %v197 = vld [vmem:[#allocation5 + $0x74] sm:$0xf]
    %v198 = vld [vmem:[#allocation5 + $0x78] sm:$0xff]
    %v199 = vld [vmem:[#allocation5 + $0x80] sm:$0xf]
    %v200 = vld [vmem:[#allocation5 + $0x84] sm:$0xff]
    %v201 = vld [vmem:[#allocation5 + $0x8c] sm:$0xf]
    %v202 = vld [vmem:[#allocation5 + $0x90] sm:$0xff]
    %v203 = vld [vmem:[#allocation5 + $0x98] sm:$0xf]
    %v204 = vld [vmem:[#allocation5 + $0x9c] sm:$0xff]
    %v205 = vld [vmem:[#allocation5 + $0xa4] sm:$0xf]
    %v206 = vld [vmem:[#allocation5 + $0xa8] sm:$0xff]
    %v207 = vld [vmem:[#allocation5 + $0xb0] sm:$0xf]
    %v208 = vld [vmem:[#allocation5 + $0xb4] sm:$0xff]
    %v209 = vld [vmem:[#allocation5 + $0xbc] sm:$0xf]
    %v210 = vld [vmem:[#allocation5 + $0xc0] sm:$0xff]
    %v211 = vld [vmem:[#allocation5 + $0xc8] sm:$0xf]
    %v212 = vld [vmem:[#allocation5 + $0xcc] sm:$0xff]
    %v213 = vld [vmem:[#allocation5 + $0xd4] sm:$0xf]
    %v214 = vld [vmem:[#allocation5 + $0xd8] sm:$0xff]
    %v215 = vld [vmem:[#allocation5 + $0xe0] sm:$0xf]
    %v216 = vld [vmem:[#allocation5 + $0xe4] sm:$0xff]
    %v217 = vld [vmem:[#allocation5 + $0xec] sm:$0xf]
    %v218 = vld [vmem:[#allocation5 + $0xf0] sm:$0xff]
    %v219 = vld [vmem:[#allocation5 + $0xf8] sm:$0xf]
    %v220 = vld [vmem:[#allocation5 + $0xfc] sm:$0xff]
    %v221 = vld [vmem:[#allocation5 + $0x104] sm:$0xf]
    %v222 = vld [vmem:[#allocation5 + $0x108] sm:$0xff]
    %v223 = vld [vmem:[#allocation5 + $0x110] sm:$0xf]
    %v224 = vld [vmem:[#allocation5 + $0x114] sm:$0xff]
    %v225 = vld [vmem:[#allocation5 + $0x11c] sm:$0xf]
    %v226 = vld [vmem:[#allocation5 + $0x120] sm:$0xff]
    %v227 = vld [vmem:[#allocation5 + $0x128] sm:$0xf]
    %v228 = vld [vmem:[#allocation5 + $0x12c] sm:$0xff]
    %v229 = vld [vmem:[#allocation5 + $0x134] sm:$0xf]
    %v230 = vld [vmem:[#allocation5 + $0x138] sm:$0xff]
    %v231 = vld [vmem:[#allocation5 + $0x140] sm:$0xf]
    %v232 = vld [vmem:[#allocation5 + $0x144] sm:$0xff]
    %v233 = vld [vmem:[#allocation5 + $0x14c] sm:$0xf]
    %v234 = vld [vmem:[#allocation5 + $0x150] sm:$0xff]
    %v235 = vld [vmem:[#allocation5 + $0x158] sm:$0xf]
    %v236 = vld [vmem:[#allocation5 + $0x15c] sm:$0xff]
    %v237 = vld [vmem:[#allocation5 + $0x164] sm:$0xf]
    %v238 = vld [vmem:[#allocation5 + $0x168] sm:$0xff]
    %v239 = vld [vmem:[#allocation5 + $0x170] sm:$0xf]
    %v240 = vld [vmem:[#allocation5 + $0x174] sm:$0xff]
    %v241 = vld [vmem:[#allocation5 + $0x17c] sm:$0xf]
    %v242 = vld [vmem:[#allocation5 + $0x180] sm:$0xff]
    %v243 = vld [vmem:[#allocation5 + $0x188] sm:$0xf]
    %v244 = vld [vmem:[#allocation5 + $0x18c] sm:$0xff]
    %v245 = vld [vmem:[#allocation5 + $0x194] sm:$0xf]
    %v246 = vld [vmem:[#allocation5 + $0x198] sm:$0xff]
    %v247 = vld [vmem:[#allocation5 + $0x1a0] sm:$0xf]
    %v248 = vld [vmem:[#allocation5 + $0x1a4] sm:$0xff]
    %v249 = vld [vmem:[#allocation5 + $0x1ac] sm:$0xf]
    %v250 = vld [vmem:[#allocation5 + $0x1b0] sm:$0xff]
    %v251 = vld [vmem:[#allocation5 + $0x1b8] sm:$0xf]
    %v252 = vld [vmem:[#allocation5 + $0x1bc] sm:$0xff]
    %v253 = vld [vmem:[#allocation5 + $0x1c4] sm:$0xf]
    %v254 = vld [vmem:[#allocation5 + $0x1c8] sm:$0xff]
    %v255 = vld [vmem:[#allocation5 + $0x1d0] sm:$0xf]
    %v256 = vld [vmem:[#allocation5 + $0x1d4] sm:$0xff]
    %v257 = vld [vmem:[#allocation5 + $0x1dc] sm:$0xf]
    %v258 = vld [vmem:[#allocation5 + $0x1e0] sm:$0xff]
    %v259 = vld [vmem:[#allocation5 + $0x1e8] sm:$0xf]
    %v260 = vld [vmem:[#allocation5 + $0x1ec] sm:$0xff]
    %v261 = vld [vmem:[#allocation5 + $0x1f4] sm:$0xf]
    %v262 = vld [vmem:[#allocation5 + $0x1f8] sm:$0xff]
    %v263 = vld [vmem:[#allocation5 + $0x200] sm:$0xf]
    %v264 = vld [vmem:[#allocation5 + $0x204] sm:$0xff]
    %v265 = vld [vmem:[#allocation5 + $0x20c] sm:$0xf]
    %v266 = vld [vmem:[#allocation5 + $0x210] sm:$0xff]
    %v267 = vld [vmem:[#allocation5 + $0x218] sm:$0xf]
    %v268 = vld [vmem:[#allocation5 + $0x21c] sm:$0xff]
    %v269 = vld [vmem:[#allocation5 + $0x224] sm:$0xf]
    %v270 = vld [vmem:[#allocation5 + $0x228] sm:$0xff]
    %v271 = vld [vmem:[#allocation5 + $0x230] sm:$0xf]
    %v272 = vld [vmem:[#allocation5 + $0x234] sm:$0xff]
    %v273 = vld [vmem:[#allocation5 + $0x23c] sm:$0xf]
    %v274 = vld [vmem:[%s3] sm:$0x7]
    %v276 = vlaneseq
    %v277 = vshrl.u32 %v276, 7
    %v278 = vsub.s32 0, %v277
    %v279 = vrot.slane %v274, %v278
    %v280 = vlaneseq
    %v281 = vshrl.u32 %v280, 7
    %v282 = vsub.s32 1, %v281
    %v283 = vrot.slane %v274, %v282
    %v284 = vlaneseq
    %v285 = vshrl.u32 %v284, 7
    %v286 = vsub.s32 2, %v285
    %v287 = vrot.slane %v274, %v286
    %v387 = vunpack.c.l.b16 %v178
    %v388 = vunpack.c.h.b16 %v178
    %v389 = vunpack.c.l.b16 %v179
    %v390 = vunpack.c.l.b16 %v180
    %v391 = vunpack.c.h.b16 %v180
    %v392 = vunpack.c.l.b16 %v181
    %v393 = vunpack.c.l.b16 %v182
    %v394 = vunpack.c.h.b16 %v182
    %v395 = vunpack.c.l.b16 %v183
    %v396 = vunpack.c.l.b16 %v184
    %v397 = vunpack.c.h.b16 %v184
    %v398 = vunpack.c.l.b16 %v185
    %v399 = vunpack.c.l.b16 %v186
    %v400 = vunpack.c.h.b16 %v186
    %v401 = vunpack.c.l.b16 %v187
    %v402 = vunpack.c.l.b16 %v188
    %v403 = vunpack.c.h.b16 %v188
    %v404 = vunpack.c.l.b16 %v189
    %v405 = vunpack.c.l.b16 %v190
    %v406 = vunpack.c.h.b16 %v190
    %v407 = vunpack.c.l.b16 %v191
    %v408 = vunpack.c.l.b16 %v192
    %v409 = vunpack.c.h.b16 %v192
    %v410 = vunpack.c.l.b16 %v193
    %v411 = vunpack.c.l.b16 %v194
    %v412 = vunpack.c.h.b16 %v194
    %v413 = vunpack.c.l.b16 %v195
    %v414 = vunpack.c.l.b16 %v196
    %v415 = vunpack.c.h.b16 %v196
    %v416 = vunpack.c.l.b16 %v197
    %v417 = vunpack.c.l.b16 %v198
    %v418 = vunpack.c.h.b16 %v198
    %v419 = vunpack.c.l.b16 %v199
    %v420 = vunpack.c.l.b16 %v200
    %v421 = vunpack.c.h.b16 %v200
    %v422 = vunpack.c.l.b16 %v201
    %v423 = vunpack.c.l.b16 %v202
    %v424 = vunpack.c.h.b16 %v202
    %v425 = vunpack.c.l.b16 %v203
    %v426 = vunpack.c.l.b16 %v204
    %v427 = vunpack.c.h.b16 %v204
    %v428 = vunpack.c.l.b16 %v205
    %v429 = vunpack.c.l.b16 %v206
    %v430 = vunpack.c.h.b16 %v206
    %v431 = vunpack.c.l.b16 %v207
    %v432 = vunpack.c.l.b16 %v208
    %v433 = vunpack.c.h.b16 %v208
    %v434 = vunpack.c.l.b16 %v209
    %v435 = vunpack.c.l.b16 %v210
    %v436 = vunpack.c.h.b16 %v210
    %v437 = vunpack.c.l.b16 %v211
    %v438 = vunpack.c.l.b16 %v212
    %v439 = vunpack.c.h.b16 %v212
    %v440 = vunpack.c.l.b16 %v213
    %v441 = vunpack.c.l.b16 %v214
    %v442 = vunpack.c.h.b16 %v214
    %v443 = vunpack.c.l.b16 %v215
    %v444 = vunpack.c.l.b16 %v216
    %v445 = vunpack.c.h.b16 %v216
    %v446 = vunpack.c.l.b16 %v217
    %v447 = vunpack.c.l.b16 %v218
    %v448 = vunpack.c.h.b16 %v218
    %v449 = vunpack.c.l.b16 %v219
    %v450 = vunpack.c.l.b16 %v220
    %v451 = vunpack.c.h.b16 %v220
    %v452 = vunpack.c.l.b16 %v221
    %v453 = vunpack.c.l.b16 %v222
    %v454 = vunpack.c.h.b16 %v222
    %v455 = vunpack.c.l.b16 %v223
    %v456 = vunpack.c.l.b16 %v224
    %v457 = vunpack.c.h.b16 %v224
    %v458 = vunpack.c.l.b16 %v225
    %v459 = vunpack.c.l.b16 %v226
    %v460 = vunpack.c.h.b16 %v226
    %v461 = vunpack.c.l.b16 %v227
    %v462 = vunpack.c.l.b16 %v228
    %v463 = vunpack.c.h.b16 %v228
    %v464 = vunpack.c.l.b16 %v229
    %v465 = vunpack.c.l.b16 %v230
    %v466 = vunpack.c.h.b16 %v230
    %v467 = vunpack.c.l.b16 %v231
    %v468 = vunpack.c.l.b16 %v232
    %v469 = vunpack.c.h.b16 %v232
    %v470 = vunpack.c.l.b16 %v233
    %v471 = vunpack.c.l.b16 %v234
    %v472 = vunpack.c.h.b16 %v234
    %v473 = vunpack.c.l.b16 %v235
    %v474 = vunpack.c.l.b16 %v236
    %v475 = vunpack.c.h.b16 %v236
    %v476 = vunpack.c.l.b16 %v237
    %v477 = vunpack.c.l.b16 %v238
    %v478 = vunpack.c.h.b16 %v238
    %v479 = vunpack.c.l.b16 %v239
    %v480 = vunpack.c.l.b16 %v240
    %v481 = vunpack.c.h.b16 %v240
    %v482 = vunpack.c.l.b16 %v241
    %v483 = vunpack.c.l.b16 %v242
    %v484 = vunpack.c.h.b16 %v242
    %v485 = vunpack.c.l.b16 %v243
    %v486 = vunpack.c.l.b16 %v244
    %v487 = vunpack.c.h.b16 %v244
    %v488 = vunpack.c.l.b16 %v245
    %v489 = vunpack.c.l.b16 %v246
    %v490 = vunpack.c.h.b16 %v246
    %v491 = vunpack.c.l.b16 %v247
    %v492 = vunpack.c.l.b16 %v248
    %v493 = vunpack.c.h.b16 %v248
    %v494 = vunpack.c.l.b16 %v249
    %v495 = vunpack.c.l.b16 %v250
    %v496 = vunpack.c.h.b16 %v250
    %v497 = vunpack.c.l.b16 %v251
    %v498 = vunpack.c.l.b16 %v252
    %v499 = vunpack.c.h.b16 %v252
    %v500 = vunpack.c.l.b16 %v253
    %v501 = vunpack.c.l.b16 %v254
    %v502 = vunpack.c.h.b16 %v254
    %v503 = vunpack.c.l.b16 %v255
    %v504 = vunpack.c.l.b16 %v256
    %v505 = vunpack.c.h.b16 %v256
    %v506 = vunpack.c.l.b16 %v257
    %v507 = vunpack.c.l.b16 %v258
    %v508 = vunpack.c.h.b16 %v258
    %v509 = vunpack.c.l.b16 %v259
    %v510 = vunpack.c.l.b16 %v260
    %v511 = vunpack.c.h.b16 %v260
    %v512 = vunpack.c.l.b16 %v261
    %v513 = vunpack.c.l.b16 %v262
    %v514 = vunpack.c.h.b16 %v262
    %v515 = vunpack.c.l.b16 %v263
    %v516 = vunpack.c.l.b16 %v264
    %v517 = vunpack.c.h.b16 %v264
    %v518 = vunpack.c.l.b16 %v265
    %v519 = vunpack.c.l.b16 %v266
    %v520 = vunpack.c.h.b16 %v266
    %v521 = vunpack.c.l.b16 %v267
    %v522 = vunpack.c.l.b16 %v268
    %v523 = vunpack.c.h.b16 %v268
    %v524 = vunpack.c.l.b16 %v269
    %v525 = vunpack.c.l.b16 %v270
    %v526 = vunpack.c.h.b16 %v270
    %v527 = vunpack.c.l.b16 %v271
    %v528 = vunpack.c.l.b16 %v272
    %v529 = vunpack.c.h.b16 %v272
    %v530 = vunpack.c.l.b16 %v273
    %v531 = vpack.c.b16 %v390, %v387
    %v532 = vpack.c.b16 %v391, %v388
    %v533 = vpack.c.b16 %v392, %v389
    %v534 = vpack.c.b16 %v396, %v393
    %v535 = vpack.c.b16 %v397, %v394
    %v536 = vpack.c.b16 %v398, %v395
    %v537 = vpack.c.b16 %v402, %v399
    %v538 = vpack.c.b16 %v403, %v400
    %v539 = vpack.c.b16 %v404, %v401
    %v540 = vpack.c.b16 %v408, %v405
    %v541 = vpack.c.b16 %v409, %v406
    %v542 = vpack.c.b16 %v410, %v407
    %v543 = vpack.c.b16 %v414, %v411
    %v544 = vpack.c.b16 %v415, %v412
    %v545 = vpack.c.b16 %v416, %v413
    %v546 = vpack.c.b16 %v420, %v417
    %v547 = vpack.c.b16 %v421, %v418
    %v548 = vpack.c.b16 %v422, %v419
    %v549 = vpack.c.b16 %v426, %v423
    %v550 = vpack.c.b16 %v427, %v424
    %v551 = vpack.c.b16 %v428, %v425
    %v552 = vpack.c.b16 %v432, %v429
    %v553 = vpack.c.b16 %v433, %v430
    %v554 = vpack.c.b16 %v434, %v431
    %v555 = vpack.c.b16 %v438, %v435
    %v556 = vpack.c.b16 %v439, %v436
    %v557 = vpack.c.b16 %v440, %v437
    %v558 = vpack.c.b16 %v444, %v441
    %v559 = vpack.c.b16 %v445, %v442
    %v560 = vpack.c.b16 %v446, %v443
    %v561 = vpack.c.b16 %v450, %v447
    %v562 = vpack.c.b16 %v451, %v448
    %v563 = vpack.c.b16 %v452, %v449
    %v564 = vpack.c.b16 %v456, %v453
    %v565 = vpack.c.b16 %v457, %v454
    %v566 = vpack.c.b16 %v458, %v455
    %v567 = vpack.c.b16 %v462, %v459
    %v568 = vpack.c.b16 %v463, %v460
    %v569 = vpack.c.b16 %v464, %v461
    %v570 = vpack.c.b16 %v468, %v465
    %v571 = vpack.c.b16 %v469, %v466
    %v572 = vpack.c.b16 %v470, %v467
    %v573 = vpack.c.b16 %v474, %v471
    %v574 = vpack.c.b16 %v475, %v472
    %v575 = vpack.c.b16 %v476, %v473
    %v576 = vpack.c.b16 %v480, %v477
    %v577 = vpack.c.b16 %v481, %v478
    %v578 = vpack.c.b16 %v482, %v479
    %v579 = vpack.c.b16 %v486, %v483
    %v580 = vpack.c.b16 %v487, %v484
    %v581 = vpack.c.b16 %v488, %v485
    %v582 = vpack.c.b16 %v492, %v489
    %v583 = vpack.c.b16 %v493, %v490
    %v584 = vpack.c.b16 %v494, %v491
    %v585 = vpack.c.b16 %v498, %v495
    %v586 = vpack.c.b16 %v499, %v496
    %v587 = vpack.c.b16 %v500, %v497
    %v588 = vpack.c.b16 %v504, %v501
    %v589 = vpack.c.b16 %v505, %v502
    %v590 = vpack.c.b16 %v506, %v503
    %v591 = vpack.c.b16 %v510, %v507
    %v592 = vpack.c.b16 %v511, %v508
    %v593 = vpack.c.b16 %v512, %v509
    %v594 = vpack.c.b16 %v516, %v513
    %v595 = vpack.c.b16 %v517, %v514
    %v596 = vpack.c.b16 %v518, %v515
    %v597 = vpack.c.b16 %v522, %v519
    %v598 = vpack.c.b16 %v523, %v520
    %v599 = vpack.c.b16 %v524, %v521
    %v600 = vpack.c.b16 %v528, %v525
    %v601 = vpack.c.b16 %v529, %v526
    %v602 = vpack.c.b16 %v530, %v527
    %675 = vmatprep.subr.bf16.mxu0 %v553
    %676 = vmatpush1.bf16.msra.mxu0 %v552
    %677 = vmatprep.subr.bf16.mxu0 %v550
    %678 = vmatpush1.bf16.msra.mxu0 %v549
    %679 = vmatprep.subr.bf16.mxu0 %v547
    %680 = vmatpush1.bf16.msra.mxu0 %v546
    %681 = vmatprep.subr.bf16.mxu0 %v544
    %682 = vmatpush1.bf16.msra.mxu0 %v543
    %683 = vmatprep.subr.bf16.mxu0 %v541
    %684 = vmatpush1.bf16.msra.mxu0 %v540
    %685 = vmatprep.subr.bf16.mxu0 %v538
    %686 = vmatpush1.bf16.msra.mxu0 %v537
    %687 = vmatprep.subr.bf16.mxu0 %v535
    %688 = vmatpush1.bf16.msra.mxu0 %v534
    %689 = vmatprep.subr.bf16.mxu0 %v532
    %690 = vmatpush1.bf16.msra.mxu0 %v531
    %691 = vmatprep.subr.bf16.mxu0 %v577
    %692 = vmatpush2.bf16.msra.mxu0 %v576
    %693 = vmatprep.subr.bf16.mxu0 %v574
    %694 = vmatpush2.bf16.msra.mxu0 %v573
    %695 = vmatprep.subr.bf16.mxu0 %v571
    %696 = vmatpush2.bf16.msra.mxu0 %v570
    %697 = vmatprep.subr.bf16.mxu0 %v568
    %698 = vmatpush2.bf16.msra.mxu0 %v567
    %699 = vmatprep.subr.bf16.mxu0 %v565
    %700 = vmatpush2.bf16.msra.mxu0 %v564
    %701 = vmatprep.subr.bf16.mxu0 %v562
    %702 = vmatpush2.bf16.msra.mxu0 %v561
    %703 = vmatprep.subr.bf16.mxu0 %v559
    %704 = vmatpush2.bf16.msra.mxu0 %v558
    %705 = vmatprep.subr.bf16.mxu0 %v556
    %706 = vmatpush2.bf16.msra.mxu0 %v555
    %707 = vmatprep.mubr.bf16.mxu0 %v170
    %708 = vmatmul.mubr.bf16.gmra.mxu0 %v166
    %v709 = vpop.f32.mrf.mxu0
    %v710 = vadd.f32 %v279, %v709
    %v711 = vpop.f32.mrf.mxu0
    %v712 = vadd.f32 %v283, %v711
    %v713 = vpop.f32.mrf.mxu0
    %v714 = vadd.f32 %v279, %v713
    %v715 = vpop.f32.mrf.mxu0
    %v716 = vadd.f32 %v283, %v715
    %717 = vmatprep.mubr.bf16.mxu0 %v171
    %718 = vmatmul.mubr.bf16.gmra.mxu0 %v167
    %v719 = vpop.f32.mrf.mxu0
    %v720 = vadd.f32 %v279, %v719
    %v721 = vpop.f32.mrf.mxu0
    %v722 = vadd.f32 %v283, %v721
    %v723 = vpop.f32.mrf.mxu0
    %v724 = vadd.f32 %v279, %v723
    %v725 = vpop.f32.mrf.mxu0
    %v726 = vadd.f32 %v283, %v725
    %727 = vmatprep.mubr.bf16.mxu0 %v172
    %728 = vmatmul.mubr.bf16.gmra.mxu0 %v168
    %v729 = vpop.f32.mrf.mxu0
    %v730 = vadd.f32 %v279, %v729
    %v731 = vpop.f32.mrf.mxu0
    %v732 = vadd.f32 %v283, %v731
    %v733 = vpop.f32.mrf.mxu0
    %v734 = vadd.f32 %v279, %v733
    %v735 = vpop.f32.mrf.mxu0
    %v736 = vadd.f32 %v283, %v735
    %737 = vmatprep.mubr.bf16.mxu0 %v173
    %738 = vmatmul.mubr.bf16.gmra.mxu0 %v169
    %v739 = vpop.f32.mrf.mxu0
    %v740 = vadd.f32 %v279, %v739
    %v741 = vpop.f32.mrf.mxu0
    %v742 = vadd.f32 %v283, %v741
    %v743 = vpop.f32.mrf.mxu0
    %v744 = vadd.f32 %v279, %v743
    %v745 = vpop.f32.mrf.mxu0
    %v746 = vadd.f32 %v283, %v745
    %747 = vdwg.mxu0
    %748 = vmatprep.subr.bf16.mxu0 %v601
    %749 = vmatpush1.bf16.msra.mxu0 %v600
    %750 = vmatprep.subr.bf16.mxu0 %v598
    %751 = vmatpush1.bf16.msra.mxu0 %v597
    %752 = vmatprep.subr.bf16.mxu0 %v595
    %753 = vmatpush1.bf16.msra.mxu0 %v594
    %754 = vmatprep.subr.bf16.mxu0 %v592
    %755 = vmatpush1.bf16.msra.mxu0 %v591
    %756 = vmatprep.subr.bf16.mxu0 %v589
    %757 = vmatpush1.bf16.msra.mxu0 %v588
    %758 = vmatprep.subr.bf16.mxu0 %v586
    %759 = vmatpush1.bf16.msra.mxu0 %v585
    %760 = vmatprep.subr.bf16.mxu0 %v583
    %761 = vmatpush1.bf16.msra.mxu0 %v582
    %762 = vmatprep.subr.bf16.mxu0 %v580
    %763 = vmatpush1.bf16.msra.mxu0 %v579
    %764 = vmatprep.subr.bf16.mxu0 0
    %765 = vmatpush2.bf16.msra.mxu0 0
    %766 = vmatprep.subr.bf16.mxu0 0
    %767 = vmatpush2.bf16.msra.mxu0 0
    %768 = vmatprep.subr.bf16.mxu0 0
    %769 = vmatpush2.bf16.msra.mxu0 0
    %770 = vmatprep.subr.bf16.mxu0 0
    %771 = vmatpush2.bf16.msra.mxu0 0
    %772 = vmatprep.subr.bf16.mxu0 0
    %773 = vmatpush2.bf16.msra.mxu0 0
    %774 = vmatprep.subr.bf16.mxu0 0
    %775 = vmatpush2.bf16.msra.mxu0 0
    %776 = vmatprep.subr.bf16.mxu0 0
    %777 = vmatpush2.bf16.msra.mxu0 0
    %778 = vmatprep.subr.bf16.mxu0 0
    %779 = vmatpush2.bf16.msra.mxu0 0
    %780 = vmatprep.mubr.bf16.mxu0 0
    %781 = vmatmul.mubr.bf16.gmra.mxu0 %v174
    %v782 = vpop.f32.mrf.mxu0
    %v783 = vadd.f32 %v710, %v782
    %v784 = vpop.f32.mrf.mxu0
    %v785 = vadd.f32 %v712, %v784
    %v786 = vpop.f32.mrf.mxu0
    %v787 = vadd.f32 %v714, %v786
    %v788 = vpop.f32.mrf.mxu0
    %v789 = vadd.f32 %v716, %v788
    %790 = vmatprep.mubr.bf16.mxu0 0
    %791 = vmatmul.mubr.bf16.gmra.mxu0 %v175
    %v792 = vpop.f32.mrf.mxu0
    %v793 = vadd.f32 %v720, %v792
    %v794 = vpop.f32.mrf.mxu0
    %v795 = vadd.f32 %v722, %v794
    %v796 = vpop.f32.mrf.mxu0
    %v797 = vadd.f32 %v724, %v796
    %v798 = vpop.f32.mrf.mxu0
    %v799 = vadd.f32 %v726, %v798
    %800 = vmatprep.mubr.bf16.mxu0 0
    %801 = vmatmul.mubr.bf16.gmra.mxu0 %v176
    %v802 = vpop.f32.mrf.mxu0
    %v803 = vadd.f32 %v730, %v802
    %v804 = vpop.f32.mrf.mxu0
    %v805 = vadd.f32 %v732, %v804
    %v806 = vpop.f32.mrf.mxu0
    %v807 = vadd.f32 %v734, %v806
    %v808 = vpop.f32.mrf.mxu0
    %v809 = vadd.f32 %v736, %v808
    %810 = vmatprep.mubr.bf16.mxu0 0
    %811 = vmatmul.mubr.bf16.gmra.mxu0 %v177
    %v812 = vpop.f32.mrf.mxu0
    %v813 = vadd.f32 %v740, %v812
    %v814 = vpop.f32.mrf.mxu0
    %v815 = vadd.f32 %v742, %v814
    %v816 = vpop.f32.mrf.mxu0
    %v817 = vadd.f32 %v744, %v816
    %v818 = vpop.f32.mrf.mxu0
    %v819 = vadd.f32 %v746, %v818
    %820 = vdwg.mxu0
    %821 = vmatprep.subr.bf16.mxu0 0
    %822 = vmatpush1.bf16.msra.mxu0 %v554
    %823 = vmatprep.subr.bf16.mxu0 0
    %824 = vmatpush1.bf16.msra.mxu0 %v551
    %825 = vmatprep.subr.bf16.mxu0 0
    %826 = vmatpush1.bf16.msra.mxu0 %v548
    %827 = vmatprep.subr.bf16.mxu0 0
    %828 = vmatpush1.bf16.msra.mxu0 %v545
    %829 = vmatprep.subr.bf16.mxu0 0
    %830 = vmatpush1.bf16.msra.mxu0 %v542
    %831 = vmatprep.subr.bf16.mxu0 0
    %832 = vmatpush1.bf16.msra.mxu0 %v539
    %833 = vmatprep.subr.bf16.mxu0 0
    %834 = vmatpush1.bf16.msra.mxu0 %v536
    %835 = vmatprep.subr.bf16.mxu0 0
    %836 = vmatpush1.bf16.msra.mxu0 %v533
    %837 = vmatprep.subr.bf16.mxu0 0
    %838 = vmatpush2.bf16.msra.mxu0 %v578
    %839 = vmatprep.subr.bf16.mxu0 0
    %840 = vmatpush2.bf16.msra.mxu0 %v575
    %841 = vmatprep.subr.bf16.mxu0 0
    %842 = vmatpush2.bf16.msra.mxu0 %v572
    %843 = vmatprep.subr.bf16.mxu0 0
    %844 = vmatpush2.bf16.msra.mxu0 %v569
    %845 = vmatprep.subr.bf16.mxu0 0
    %846 = vmatpush2.bf16.msra.mxu0 %v566
    %847 = vmatprep.subr.bf16.mxu0 0
    %848 = vmatpush2.bf16.msra.mxu0 %v563
    %849 = vmatprep.subr.bf16.mxu0 0
    %850 = vmatpush2.bf16.msra.mxu0 %v560
    %851 = vmatprep.subr.bf16.mxu0 0
    %852 = vmatpush2.bf16.msra.mxu0 %v557
    %853 = vmatprep.mubr.bf16.mxu0 %v170
    %854 = vmatmul.mubr.bf16.gmra.mxu0 %v166
    %v855 = vpop.f32.mrf.mxu0
    %v856 = vadd.f32 %v287, %v855
    %v857 = vpop.f32.mrf.mxu0
    %v858 = vpop.f32.mrf.mxu0
    %v859 = vadd.f32 %v287, %v858
    %v860 = vpop.f32.mrf.mxu0
    %861 = vmatprep.mubr.bf16.mxu0 %v171
    %862 = vmatmul.mubr.bf16.gmra.mxu0 %v167
    %v863 = vpop.f32.mrf.mxu0
    %v864 = vadd.f32 %v287, %v863
    %v865 = vpop.f32.mrf.mxu0
    %v866 = vpop.f32.mrf.mxu0
    %v867 = vadd.f32 %v287, %v866
    %v868 = vpop.f32.mrf.mxu0
    %869 = vmatprep.mubr.bf16.mxu0 %v172
    %870 = vmatmul.mubr.bf16.gmra.mxu0 %v168
    %v871 = vpop.f32.mrf.mxu0
    %v872 = vadd.f32 %v287, %v871
    %v873 = vpop.f32.mrf.mxu0
    %v874 = vpop.f32.mrf.mxu0
    %v875 = vadd.f32 %v287, %v874
    %v876 = vpop.f32.mrf.mxu0
    %877 = vmatprep.mubr.bf16.mxu0 %v173
    %878 = vmatmul.mubr.bf16.gmra.mxu0 %v169
    %v879 = vpop.f32.mrf.mxu0
    %v880 = vadd.f32 %v287, %v879
    %v881 = vpop.f32.mrf.mxu0
    %v882 = vpop.f32.mrf.mxu0
    %v883 = vadd.f32 %v287, %v882
    %v884 = vpop.f32.mrf.mxu0
    %885 = vdwg.mxu0
    %886 = vmatprep.subr.bf16.mxu0 0
    %887 = vmatpush1.bf16.msra.mxu0 %v602
    %888 = vmatprep.subr.bf16.mxu0 0
    %889 = vmatpush1.bf16.msra.mxu0 %v599
    %890 = vmatprep.subr.bf16.mxu0 0
    %891 = vmatpush1.bf16.msra.mxu0 %v596
    %892 = vmatprep.subr.bf16.mxu0 0
    %893 = vmatpush1.bf16.msra.mxu0 %v593
    %894 = vmatprep.subr.bf16.mxu0 0
    %895 = vmatpush1.bf16.msra.mxu0 %v590
    %896 = vmatprep.subr.bf16.mxu0 0
    %897 = vmatpush1.bf16.msra.mxu0 %v587
    %898 = vmatprep.subr.bf16.mxu0 0
    %899 = vmatpush1.bf16.msra.mxu0 %v584
    %900 = vmatprep.subr.bf16.mxu0 0
    %901 = vmatpush1.bf16.msra.mxu0 %v581
    %902 = vmatprep.subr.bf16.mxu0 0
    %903 = vmatpush2.bf16.msra.mxu0 0
    %904 = vmatprep.subr.bf16.mxu0 0
    %905 = vmatpush2.bf16.msra.mxu0 0
    %906 = vmatprep.subr.bf16.mxu0 0
    %907 = vmatpush2.bf16.msra.mxu0 0
    %908 = vmatprep.subr.bf16.mxu0 0
    %909 = vmatpush2.bf16.msra.mxu0 0
    %910 = vmatprep.subr.bf16.mxu0 0
    %911 = vmatpush2.bf16.msra.mxu0 0
    %912 = vmatprep.subr.bf16.mxu0 0
    %913 = vmatpush2.bf16.msra.mxu0 0
    %914 = vmatprep.subr.bf16.mxu0 0
    %915 = vmatpush2.bf16.msra.mxu0 0
    %916 = vmatprep.subr.bf16.mxu0 0
    %917 = vmatpush2.bf16.msra.mxu0 0
    %918 = vmatprep.mubr.bf16.mxu0 0
    %919 = vmatmul.mubr.bf16.gmra.mxu0 %v174
    %v920 = vpop.f32.mrf.mxu0
    %v921 = vadd.f32 %v856, %v920
    %v922 = vpop.f32.mrf.mxu0
    %v923 = vpop.f32.mrf.mxu0
    %v924 = vadd.f32 %v859, %v923
    %v925 = vpop.f32.mrf.mxu0
    %926 = vmatprep.mubr.bf16.mxu0 0
    %927 = vmatmul.mubr.bf16.gmra.mxu0 %v175
    %v928 = vpop.f32.mrf.mxu0
    %v929 = vadd.f32 %v864, %v928
    %v930 = vpop.f32.mrf.mxu0
    %v931 = vpop.f32.mrf.mxu0
    %v932 = vadd.f32 %v867, %v931
    %v933 = vpop.f32.mrf.mxu0
    %934 = vmatprep.mubr.bf16.mxu0 0
    %935 = vmatmul.mubr.bf16.gmra.mxu0 %v176
    %v936 = vpop.f32.mrf.mxu0
    %v937 = vadd.f32 %v872, %v936
    %v938 = vpop.f32.mrf.mxu0
    %v939 = vpop.f32.mrf.mxu0
    %v940 = vadd.f32 %v875, %v939
    %v941 = vpop.f32.mrf.mxu0
    %942 = vmatprep.mubr.bf16.mxu0 0
    %943 = vmatmul.mubr.bf16.gmra.mxu0 %v177
    %v944 = vpop.f32.mrf.mxu0
    %v945 = vadd.f32 %v880, %v944
    %v946 = vpop.f32.mrf.mxu0
    %v947 = vpop.f32.mrf.mxu0
    %v948 = vadd.f32 %v883, %v947
    %v949 = vpop.f32.mrf.mxu0
    %950 = vdwg.mxu0
    %v951 = vmax.f32 %v783, 0.0
    %v952 = vmax.f32 %v785, 0.0
    %v953 = vmax.f32 %v921, 0.0
    %v954 = vmax.f32 %v787, 0.0
    %v955 = vmax.f32 %v789, 0.0
    %v956 = vmax.f32 %v924, 0.0
    %v957 = vmax.f32 %v793, 0.0
    %v958 = vmax.f32 %v795, 0.0
    %v959 = vmax.f32 %v929, 0.0
    %v960 = vmax.f32 %v797, 0.0
    %v961 = vmax.f32 %v799, 0.0
    %v962 = vmax.f32 %v932, 0.0
    %v963 = vmax.f32 %v803, 0.0
    %v964 = vmax.f32 %v805, 0.0
    %v965 = vmax.f32 %v937, 0.0
    %v966 = vmax.f32 %v807, 0.0
    %v967 = vmax.f32 %v809, 0.0
    %v968 = vmax.f32 %v940, 0.0
    %v969 = vmax.f32 %v813, 0.0
    %v970 = vmax.f32 %v815, 0.0
    %v971 = vmax.f32 %v945, 0.0
    %v972 = vmax.f32 %v817, 0.0
    %v973 = vmax.f32 %v819, 0.0
    %v974 = vmax.f32 %v948, 0.0
    %v975 = vadd.f32 %v951, %v952
    %v976 = vadd.f32 %v954, %v955
    %v977 = vadd.f32 %v957, %v958
    %v978 = vadd.f32 %v960, %v961
    %v979 = vadd.f32 %v963, %v964
    %v980 = vadd.f32 %v966, %v967
    %v981 = vadd.f32 %v969, %v970
    %v982 = vadd.f32 %v972, %v973
    %v983 = vrot.slane %v953, 7
    %v984 = vrot.slane %v956, 7
    %v985 = vrot.slane %v959, 7
    %v986 = vrot.slane %v962, 7
    %v987 = vrot.slane %v965, 7
    %v988 = vrot.slane %v968, 7
    %v989 = vrot.slane %v971, 7
    %v990 = vrot.slane %v974, 7
    %v991 = vsel %vm92, %v989, %v990
    %v992 = vsel %vm92, %v988, %v989
    %v993 = vsel %vm92, %v987, %v988
    %v994 = vsel %vm92, %v986, %v987
    %v995 = vsel %vm92, %v985, %v986
    %v996 = vsel %vm92, %v984, %v985
    %v997 = vsel %vm92, %v983, %v984
    %v998 = vsel %vm92, %v990, %v983
    %v999 = vsel %vm76, 0.0, %v998
    %v1000 = vsel %vm77, 0.0, %v997
    %v1001 = vsel %vm78, 0.0, %v996
    %v1002 = vsel %vm79, 0.0, %v995
    %v1003 = vsel %vm76, 0.0, %v994
    %v1004 = vsel %vm77, 0.0, %v993
    %v1005 = vsel %vm78, 0.0, %v992
    %v1006 = vsel %vm79, 0.0, %v991
    %v1007 = vrot.slane %v953, 1
    %v1008 = vrot.slane %v956, 1
    %v1009 = vrot.slane %v959, 1
    %v1010 = vrot.slane %v962, 1
    %v1011 = vrot.slane %v965, 1
    %v1012 = vrot.slane %v968, 1
    %v1013 = vrot.slane %v971, 1
    %v1014 = vrot.slane %v974, 1
    %v1015 = vsel %vm109, %v1013, %v1014
    %v1016 = vsel %vm109, %v1012, %v1013
    %v1017 = vsel %vm109, %v1011, %v1012
    %v1018 = vsel %vm109, %v1010, %v1011
    %v1019 = vsel %vm109, %v1009, %v1010
    %v1020 = vsel %vm109, %v1008, %v1009
    %v1021 = vsel %vm109, %v1007, %v1008
    %v1022 = vsel %vm109, %v1014, %v1007
    %v1023 = vsel %vm80, 0.0, %v1021
    %v1024 = vsel %vm81, 0.0, %v1020
    %v1025 = vsel %vm82, 0.0, %v1019
    %v1026 = vsel %vm83, 0.0, %v1018
    %v1027 = vsel %vm80, 0.0, %v1017
    %v1028 = vsel %vm81, 0.0, %v1016
    %v1029 = vsel %vm82, 0.0, %v1015
    %v1030 = vsel %vm83, 0.0, %v1022
    %v1031 = vpack.c.bf16 %v1000, %v999
    %v1032 = vpack.c.bf16 %v1002, %v1001
    %v1033 = vpack.c.bf16 %v1004, %v1003
    %v1034 = vpack.c.bf16 %v1006, %v1005
    %v1035 = vpack.c.bf16 %v956, %v953
    %v1036 = vpack.c.bf16 %v962, %v959
    %v1037 = vpack.c.bf16 %v968, %v965
    %v1038 = vpack.c.bf16 %v974, %v971
    %v1039 = vpack.c.bf16 %v1024, %v1023
    %v1040 = vpack.c.bf16 %v1026, %v1025
    %v1041 = vpack.c.bf16 %v1028, %v1027
    %v1042 = vpack.c.bf16 %v1030, %v1029
    %v1043 = vld [vmem:[#allocation7] sm:$0xf]
    %v1044 = vld [vmem:[#allocation7 + $0x4] sm:$0xf]
    %v1045 = vld [vmem:[#allocation7 + $0x8] sm:$0xf]
    %v1046 = vld [vmem:[#allocation7 + $0xc] sm:$0xf]
    %v1047 = vld [vmem:[#allocation7 + $0x10] sm:$0xf]
    %v1048 = vld [vmem:[#allocation7 + $0x14] sm:$0xf]
    %v1049 = vld [vmem:[#allocation7 + $0x18] sm:$0xf]
    %v1050 = vld [vmem:[#allocation7 + $0x1c] sm:$0xf]
    %v1051 = vld [vmem:[#allocation7 + $0x20] sm:$0xf]
    %v1052 = vld [vmem:[#allocation7 + $0x24] sm:$0xf]
    %v1053 = vld [vmem:[#allocation7 + $0x28] sm:$0xf]
    %v1054 = vld [vmem:[#allocation7 + $0x2c] sm:$0xf]
    %v1055 = vld [vmem:[#allocation7 + $0x30] sm:$0xf]
    %v1056 = vld [vmem:[#allocation7 + $0x34] sm:$0xf]
    %v1057 = vld [vmem:[#allocation7 + $0x38] sm:$0xf]
    %v1058 = vld [vmem:[#allocation7 + $0x3c] sm:$0xf]
    %v1059 = vld [vmem:[#allocation7 + $0x40] sm:$0xf]
    %v1060 = vld [vmem:[#allocation7 + $0x44] sm:$0xf]
    %v1061 = vld [vmem:[#allocation7 + $0x48] sm:$0xf]
    %v1062 = vld [vmem:[#allocation7 + $0x4c] sm:$0xf]
    %v1063 = vld [vmem:[#allocation7 + $0x50] sm:$0xf]
    %v1064 = vld [vmem:[#allocation7 + $0x54] sm:$0xf]
    %v1065 = vld [vmem:[#allocation7 + $0x58] sm:$0xf]
    %v1066 = vld [vmem:[#allocation7 + $0x5c] sm:$0xf]
    %v1067 = vld [vmem:[#allocation7 + $0x60] sm:$0xf]
    %v1068 = vld [vmem:[#allocation7 + $0x64] sm:$0xf]
    %v1069 = vld [vmem:[#allocation7 + $0x68] sm:$0xf]
    %v1070 = vld [vmem:[#allocation7 + $0x6c] sm:$0xf]
    %v1071 = vld [vmem:[#allocation7 + $0x70] sm:$0xf]
    %v1072 = vld [vmem:[#allocation7 + $0x74] sm:$0xf]
    %v1073 = vld [vmem:[#allocation7 + $0x78] sm:$0xf]
    %v1074 = vld [vmem:[#allocation7 + $0x7c] sm:$0xf]
    %v1075 = vld [vmem:[#allocation7 + $0x80] sm:$0xf]
    %v1076 = vld [vmem:[#allocation7 + $0x84] sm:$0xf]
    %v1077 = vld [vmem:[#allocation7 + $0x88] sm:$0xf]
    %v1078 = vld [vmem:[#allocation7 + $0x8c] sm:$0xf]
    %v1079 = vld [vmem:[#allocation7 + $0x90] sm:$0xf]
    %v1080 = vld [vmem:[#allocation7 + $0x94] sm:$0xf]
    %v1081 = vld [vmem:[#allocation7 + $0x98] sm:$0xf]
    %v1082 = vld [vmem:[#allocation7 + $0x9c] sm:$0xf]
    %v1083 = vld [vmem:[#allocation7 + $0xa0] sm:$0xf]
    %v1084 = vld [vmem:[#allocation7 + $0xa4] sm:$0xf]
    %v1085 = vld [vmem:[#allocation7 + $0xa8] sm:$0xf]
    %v1086 = vld [vmem:[#allocation7 + $0xac] sm:$0xf]
    %v1087 = vld [vmem:[#allocation7 + $0xb0] sm:$0xf]
    %v1088 = vld [vmem:[#allocation7 + $0xb4] sm:$0xf]
    %v1089 = vld [vmem:[#allocation7 + $0xb8] sm:$0xf]
    %v1090 = vld [vmem:[#allocation7 + $0xbc] sm:$0xf]
    %v1091 = vld [vmem:[%s4] sm:$0x1]
    %v1093 = vlaneseq
    %v1094 = vshrl.u32 %v1093, 7
    %v1095 = vsub.s32 0, %v1094
    %v1096 = vrot.slane %v1091, %v1095
    %v1146 = vunpack.c.l.b16 %v1043
    %v1147 = vunpack.c.l.b16 %v1044
    %v1148 = vunpack.c.l.b16 %v1045
    %v1149 = vunpack.c.l.b16 %v1046
    %v1150 = vunpack.c.l.b16 %v1047
    %v1151 = vunpack.c.l.b16 %v1048
    %v1152 = vunpack.c.l.b16 %v1049
    %v1153 = vunpack.c.l.b16 %v1050
    %v1154 = vunpack.c.l.b16 %v1051
    %v1155 = vunpack.c.l.b16 %v1052
    %v1156 = vunpack.c.l.b16 %v1053
    %v1157 = vunpack.c.l.b16 %v1054
    %v1158 = vunpack.c.l.b16 %v1055
    %v1159 = vunpack.c.l.b16 %v1056
    %v1160 = vunpack.c.l.b16 %v1057
    %v1161 = vunpack.c.l.b16 %v1058
    %v1162 = vunpack.c.l.b16 %v1059
    %v1163 = vunpack.c.l.b16 %v1060
    %v1164 = vunpack.c.l.b16 %v1061
    %v1165 = vunpack.c.l.b16 %v1062
    %v1166 = vunpack.c.l.b16 %v1063
    %v1167 = vunpack.c.l.b16 %v1064
    %v1168 = vunpack.c.l.b16 %v1065
    %v1169 = vunpack.c.l.b16 %v1066
    %v1170 = vunpack.c.l.b16 %v1067
    %v1171 = vunpack.c.l.b16 %v1068
    %v1172 = vunpack.c.l.b16 %v1069
    %v1173 = vunpack.c.l.b16 %v1070
    %v1174 = vunpack.c.l.b16 %v1071
    %v1175 = vunpack.c.l.b16 %v1072
    %v1176 = vunpack.c.l.b16 %v1073
    %v1177 = vunpack.c.l.b16 %v1074
    %v1178 = vunpack.c.l.b16 %v1075
    %v1179 = vunpack.c.l.b16 %v1076
    %v1180 = vunpack.c.l.b16 %v1077
    %v1181 = vunpack.c.l.b16 %v1078
    %v1182 = vunpack.c.l.b16 %v1079
    %v1183 = vunpack.c.l.b16 %v1080
    %v1184 = vunpack.c.l.b16 %v1081
    %v1185 = vunpack.c.l.b16 %v1082
    %v1186 = vunpack.c.l.b16 %v1083
    %v1187 = vunpack.c.l.b16 %v1084
    %v1188 = vunpack.c.l.b16 %v1085
    %v1189 = vunpack.c.l.b16 %v1086
    %v1190 = vunpack.c.l.b16 %v1087
    %v1191 = vunpack.c.l.b16 %v1088
    %v1192 = vunpack.c.l.b16 %v1089
    %v1193 = vunpack.c.l.b16 %v1090
    %v1194 = vpack.c.b16 %v1147, %v1146
    %v1195 = vpack.c.b16 %v1149, %v1148
    %v1196 = vpack.c.b16 %v1151, %v1150
    %v1197 = vpack.c.b16 %v1153, %v1152
    %v1198 = vpack.c.b16 %v1155, %v1154
    %v1199 = vpack.c.b16 %v1157, %v1156
    %v1200 = vpack.c.b16 %v1159, %v1158
    %v1201 = vpack.c.b16 %v1161, %v1160
    %v1202 = vpack.c.b16 %v1163, %v1162
    %v1203 = vpack.c.b16 %v1165, %v1164
    %v1204 = vpack.c.b16 %v1167, %v1166
    %v1205 = vpack.c.b16 %v1169, %v1168
    %v1206 = vpack.c.b16 %v1171, %v1170
    %v1207 = vpack.c.b16 %v1173, %v1172
    %v1208 = vpack.c.b16 %v1175, %v1174
    %v1209 = vpack.c.b16 %v1177, %v1176
    %v1210 = vpack.c.b16 %v1179, %v1178
    %v1211 = vpack.c.b16 %v1181, %v1180
    %v1212 = vpack.c.b16 %v1183, %v1182
    %v1213 = vpack.c.b16 %v1185, %v1184
    %v1214 = vpack.c.b16 %v1187, %v1186
    %v1215 = vpack.c.b16 %v1189, %v1188
    %v1216 = vpack.c.b16 %v1191, %v1190
    %v1217 = vpack.c.b16 %v1193, %v1192
    %1242 = vmatprep.subr.bf16.mxu0 0
    %1243 = vmatpush1.bf16.msra.mxu0 %v1201
    %1244 = vmatprep.subr.bf16.mxu0 0
    %1245 = vmatpush1.bf16.msra.mxu0 %v1200
    %1246 = vmatprep.subr.bf16.mxu0 0
    %1247 = vmatpush1.bf16.msra.mxu0 %v1199
    %1248 = vmatprep.subr.bf16.mxu0 0
    %1249 = vmatpush1.bf16.msra.mxu0 %v1198
    %1250 = vmatprep.subr.bf16.mxu0 0
    %1251 = vmatpush1.bf16.msra.mxu0 %v1197
    %1252 = vmatprep.subr.bf16.mxu0 0
    %1253 = vmatpush1.bf16.msra.mxu0 %v1196
    %1254 = vmatprep.subr.bf16.mxu0 0
    %1255 = vmatpush1.bf16.msra.mxu0 %v1195
    %1256 = vmatprep.subr.bf16.mxu0 0
    %1257 = vmatpush1.bf16.msra.mxu0 %v1194
    %1258 = vmatprep.subr.bf16.mxu0 0
    %1259 = vmatpush2.bf16.msra.mxu0 %v1209
    %1260 = vmatprep.subr.bf16.mxu0 0
    %1261 = vmatpush2.bf16.msra.mxu0 %v1208
    %1262 = vmatprep.subr.bf16.mxu0 0
    %1263 = vmatpush2.bf16.msra.mxu0 %v1207
    %1264 = vmatprep.subr.bf16.mxu0 0
    %1265 = vmatpush2.bf16.msra.mxu0 %v1206
    %1266 = vmatprep.subr.bf16.mxu0 0
    %1267 = vmatpush2.bf16.msra.mxu0 %v1205
    %1268 = vmatprep.subr.bf16.mxu0 0
    %1269 = vmatpush2.bf16.msra.mxu0 %v1204
    %1270 = vmatprep.subr.bf16.mxu0 0
    %1271 = vmatpush2.bf16.msra.mxu0 %v1203
    %1272 = vmatprep.subr.bf16.mxu0 0
    %1273 = vmatpush2.bf16.msra.mxu0 %v1202
    %1274 = vmatprep.mubr.bf16.mxu0 %v1035
    %1275 = vmatmul.mubr.bf16.gmra.mxu0 %v1031
    %v1276 = vpop.f32.mrf.mxu0
    %v1277 = vadd.f32 %v1096, %v1276
    %v1278 = vpop.f32.mrf.mxu0
    %v1279 = vpop.f32.mrf.mxu0
    %v1280 = vadd.f32 %v1096, %v1279
    %v1281 = vpop.f32.mrf.mxu0
    %1282 = vmatprep.mubr.bf16.mxu0 %v1036
    %1283 = vmatmul.mubr.bf16.gmra.mxu0 %v1032
    %v1284 = vpop.f32.mrf.mxu0
    %v1285 = vadd.f32 %v1096, %v1284
    %v1286 = vpop.f32.mrf.mxu0
    %v1287 = vpop.f32.mrf.mxu0
    %v1288 = vadd.f32 %v1096, %v1287
    %v1289 = vpop.f32.mrf.mxu0
    %1290 = vmatprep.mubr.bf16.mxu0 %v1037
    %1291 = vmatmul.mubr.bf16.gmra.mxu0 %v1033
    %v1292 = vpop.f32.mrf.mxu0
    %v1293 = vadd.f32 %v1096, %v1292
    %v1294 = vpop.f32.mrf.mxu0
    %v1295 = vpop.f32.mrf.mxu0
    %v1296 = vadd.f32 %v1096, %v1295
    %v1297 = vpop.f32.mrf.mxu0
    %1298 = vmatprep.mubr.bf16.mxu0 %v1038
    %1299 = vmatmul.mubr.bf16.gmra.mxu0 %v1034
    %v1300 = vpop.f32.mrf.mxu0
    %v1301 = vadd.f32 %v1096, %v1300
    %v1302 = vpop.f32.mrf.mxu0
    %v1303 = vpop.f32.mrf.mxu0
    %v1304 = vadd.f32 %v1096, %v1303
    %v1305 = vpop.f32.mrf.mxu0
    %1306 = vdwg.mxu0
    %1307 = vmatprep.subr.bf16.mxu0 0
    %1308 = vmatpush1.bf16.msra.mxu0 %v1217
    %1309 = vmatprep.subr.bf16.mxu0 0
    %1310 = vmatpush1.bf16.msra.mxu0 %v1216
    %1311 = vmatprep.subr.bf16.mxu0 0
    %1312 = vmatpush1.bf16.msra.mxu0 %v1215
    %1313 = vmatprep.subr.bf16.mxu0 0
    %1314 = vmatpush1.bf16.msra.mxu0 %v1214
    %1315 = vmatprep.subr.bf16.mxu0 0
    %1316 = vmatpush1.bf16.msra.mxu0 %v1213
    %1317 = vmatprep.subr.bf16.mxu0 0
    %1318 = vmatpush1.bf16.msra.mxu0 %v1212
    %1319 = vmatprep.subr.bf16.mxu0 0
    %1320 = vmatpush1.bf16.msra.mxu0 %v1211
    %1321 = vmatprep.subr.bf16.mxu0 0
    %1322 = vmatpush1.bf16.msra.mxu0 %v1210
    %1323 = vmatprep.subr.bf16.mxu0 0
    %1324 = vmatpush2.bf16.msra.mxu0 0
    %1325 = vmatprep.subr.bf16.mxu0 0
    %1326 = vmatpush2.bf16.msra.mxu0 0
    %1327 = vmatprep.subr.bf16.mxu0 0
    %1328 = vmatpush2.bf16.msra.mxu0 0
    %1329 = vmatprep.subr.bf16.mxu0 0
    %1330 = vmatpush2.bf16.msra.mxu0 0
    %1331 = vmatprep.subr.bf16.mxu0 0
    %1332 = vmatpush2.bf16.msra.mxu0 0
    %1333 = vmatprep.subr.bf16.mxu0 0
    %1334 = vmatpush2.bf16.msra.mxu0 0
    %1335 = vmatprep.subr.bf16.mxu0 0
    %1336 = vmatpush2.bf16.msra.mxu0 0
    %1337 = vmatprep.subr.bf16.mxu0 0
    %1338 = vmatpush2.bf16.msra.mxu0 0
    %1339 = vmatprep.mubr.bf16.mxu0 0
    %1340 = vmatmul.mubr.bf16.gmra.mxu0 %v1039
    %v1341 = vpop.f32.mrf.mxu0
    %v1342 = vadd.f32 %v1277, %v1341
    %v1343 = vpop.f32.mrf.mxu0
    %v1344 = vpop.f32.mrf.mxu0
    %v1345 = vadd.f32 %v1280, %v1344
    %v1346 = vpop.f32.mrf.mxu0
    %1347 = vmatprep.mubr.bf16.mxu0 0
    %1348 = vmatmul.mubr.bf16.gmra.mxu0 %v1040
    %v1349 = vpop.f32.mrf.mxu0
    %v1350 = vadd.f32 %v1285, %v1349
    %v1351 = vpop.f32.mrf.mxu0
    %v1352 = vpop.f32.mrf.mxu0
    %v1353 = vadd.f32 %v1288, %v1352
    %v1354 = vpop.f32.mrf.mxu0
    %1355 = vmatprep.mubr.bf16.mxu0 0
    %1356 = vmatmul.mubr.bf16.gmra.mxu0 %v1041
    %v1357 = vpop.f32.mrf.mxu0
    %v1358 = vadd.f32 %v1293, %v1357
    %v1359 = vpop.f32.mrf.mxu0
    %v1360 = vpop.f32.mrf.mxu0
    %v1361 = vadd.f32 %v1296, %v1360
    %v1362 = vpop.f32.mrf.mxu0
    %1363 = vmatprep.mubr.bf16.mxu0 0
    %1364 = vmatmul.mubr.bf16.gmra.mxu0 %v1042
    %v1365 = vpop.f32.mrf.mxu0
    %v1366 = vadd.f32 %v1301, %v1365
    %v1367 = vpop.f32.mrf.mxu0
    %v1368 = vpop.f32.mrf.mxu0
    %v1369 = vadd.f32 %v1304, %v1368
    %v1370 = vpop.f32.mrf.mxu0
    %1371 = vdwg.mxu0
    %v1372 = vmax.f32 %v1342, 0.0
    %v1373 = vmax.f32 %v1345, 0.0
    %v1374 = vmax.f32 %v1350, 0.0
    %v1375 = vmax.f32 %v1353, 0.0
    %v1376 = vmax.f32 %v1358, 0.0
    %v1377 = vmax.f32 %v1361, 0.0
    %v1378 = vmax.f32 %v1366, 0.0
    %v1379 = vmax.f32 %v1369, 0.0
    %v1380 = vadd.f32 %v975, %v1372
    %v1381 = vadd.f32 %v976, %v1373
    %v1382 = vadd.f32 %v977, %v1374
    %v1383 = vadd.f32 %v978, %v1375
    %v1384 = vadd.f32 %v979, %v1376
    %v1385 = vadd.f32 %v980, %v1377
    %v1386 = vadd.f32 %v981, %v1378
    %v1387 = vadd.f32 %v982, %v1379
    %v1388 = vadd.f32 %v1380, %v158
    %v1389 = vadd.f32 %v1381, %v159
    %v1390 = vadd.f32 %v1382, %v160
    %v1391 = vadd.f32 %v1383, %v161
    %v1392 = vadd.f32 %v1384, %v162
    %v1393 = vadd.f32 %v1385, %v163
    %v1394 = vadd.f32 %v1386, %v164
    %v1395 = vadd.f32 %v1387, %v165
    %1396 = vst [vmem:[#allocation8] sm:$0xff] %v1388
    %1397 = vst [vmem:[#allocation8 + $0x8] sm:$0xff] %v1389
    %1398 = vst [vmem:[#allocation8 + $0x10] sm:$0xff] %v1390
    %1399 = vst [vmem:[#allocation8 + $0x18] sm:$0xff] %v1391
    %1400 = vst [vmem:[#allocation8 + $0x20] sm:$0xff] %v1392
    %1401 = vst [vmem:[#allocation8 + $0x28] sm:$0xff] %v1393
    %1402 = vst [vmem:[#allocation8 + $0x30] sm:$0xff] %v1394
    %1403 = vst [vmem:[#allocation8 + $0x38] sm:$0xff] %v1395
    // Predicated region
    $region34: #{tpu_custom_call.1} parent=1 // pred_check
      _
    $region35: #{tpu_custom_call.1} parent=1 // pred_check_branch
      %1405 = sbr.rel (0) target = $region37
    $region36: #{tpu_custom_call.1} parent=1 // pred_region
      %s1407 = ssub.s32 1024, 1024
      %1408 = vsyncadd [#allocation4], %s1407
      %s1409 = sshll.u32 [#allocation8], 4
      %s1410 = int_to_ptr.vmem [resolvable:$true] %s1409
      %1415 = dma.vmem_to_hbm [thread:$0]  %s1410, 1024, %s5, [#allocation4], 128, 128, 8
    $region37: #{tpu_custom_call.1} parent=1 // pred_fallthru
      _
    // Predicated region
    $region38: #{tpu_custom_call.1} parent=1 // pred_check
      _
    $region39: #{tpu_custom_call.1} parent=1 // pred_check_branch
      %1417 = sbr.rel (0) target = $region41
    $region40: #{tpu_custom_call.1} parent=1 // pred_region
      %1418 = dma.done [#allocation4], 1024
    $region41: #{tpu_custom_call.1} parent=1 // pred_fallthru
      _
    %1419 = vsyncpa [#allocation3], 1
    %1420 = vsyncpa [#allocation6], 1
    %1421 = vsyncpa [#allocation4], 1

</llo_original>
